<compile_context>
chip_gen: v5e
topology: v5e:2x2
jax: 0.10.0
libtpu: 0.0.40
codegen_flags: <defaults>
</compile_context>

<pallas_src>
import jax
import jax.numpy as jnp
from jax import lax
from jax.experimental import pallas as pl
from jax.experimental.pallas import tpu as pltpu

_LANE = 128


def mlp_kernel(x_ref, w1_ref, b1_ref, w2_ref, b2_ref, w3_ref, b3_ref, oT_ref):
    # x_ref: (TILE_B, d_in) contiguous rows of the input.
    # w_i: (out_i, in_i) PyTorch layout; b_i: (out_i, 1) f32; oT_ref: (10, TILE_B).
    x = x_ref[...].astype(w1_ref.dtype)
    # fc1 + ReLU: h1T = relu(W1 @ x^T + b1).  The transpose is fused into the MXU
    # contraction (lhs dim 1 with rhs dim 1) -> no standalone transpose pass.
    h1 = lax.dot_general(w1_ref[...], x, (((1,), (1,)), ((), ())),
                         preferred_element_type=jnp.float32)
    h1 = jnp.maximum(h1 + b1_ref[...], 0.0).astype(w2_ref.dtype)
    # fc2 + ReLU  (M=5, K=4, N=TILE_B)
    h2 = jnp.dot(w2_ref[...], h1, preferred_element_type=jnp.float32)
    h2 = jnp.maximum(h2 + b2_ref[...], 0.0).astype(w3_ref.dtype)
    # fc3 (no activation)  (M=10, K=5, N=TILE_B)
    out = jnp.dot(w3_ref[...], h2, preferred_element_type=jnp.float32) + b3_ref[...]
    oT_ref[...] = out.astype(oT_ref.dtype)  # lane-dense (10, TILE_B) store


def _pick_tile(batch, tile_b):
    """Lane-align tile_b; force >=2 grid steps when possible (v7x megacore)."""
    tile_b = max(_LANE, (tile_b // _LANE) * _LANE)
    if batch <= _LANE:
        return batch  # single full-extent block (any B); (8,128) rule satisfied via full dims
    # At least two lane-aligned steps so the "parallel" batch axis can shard across 2 TCs.
    two_step = pl.cdiv(pl.cdiv(batch, 2), _LANE) * _LANE
    return min(tile_b, two_step)


def mlp_3l_forward_transposed(x, params, *, tile_b=32768,
                              compute_dtype=jnp.bfloat16, out_dtype=None):
    """x: (B, d_in).  Returns the output in lane-dense (10, B) layout (no boundary transposes)."""
    B, d_in = x.shape
    compute_dtype = x.dtype if compute_dtype is None else compute_dtype
    out_dtype = x.dtype if out_dtype is None else out_dtype

    # Tiny weights: cast in the wrapper (negligible). Biases stay f32 (added post-accumulation).
    w1 = params["w1"].astype(compute_dtype)
    w2 = params["w2"].astype(compute_dtype)
    w3 = params["w3"].astype(compute_dtype)
    b1, b2, b3 = params["b1"], params["b2"], params["b3"]
    d_out = w3.shape[0]

    tile_b = _pick_tile(B, tile_b)
    grid = (pl.cdiv(B, tile_b),)

    cost = pl.CostEstimate(
        flops=2 * B * (d_in * 4 + 4 * 5 + 5 * 10),
        transcendentals=0,
        bytes_accessed=int(x.size) * x.dtype.itemsize
        + B * d_out * jnp.dtype(out_dtype).itemsize,
    )

    out_T = pl.pallas_call(
        mlp_kernel,
        out_shape=jax.ShapeDtypeStruct((d_out, B), out_dtype),
        grid=grid,
        in_specs=[
            # Streamed, double-buffered x rows.  (If a v5e trace ever shows exposed input DMA,
            # add pipeline_mode=pl.Buffered(3) here.)
            pl.BlockSpec((tile_b, d_in), lambda i: (i, 0)),
            pl.BlockSpec(w1.shape, lambda i: (0, 0)),  # invariant -> stays resident
            pl.BlockSpec(b1.shape, lambda i: (0, 0)),
            pl.BlockSpec(w2.shape, lambda i: (0, 0)),
            pl.BlockSpec(b2.shape, lambda i: (0, 0)),
            pl.BlockSpec(w3.shape, lambda i: (0, 0)),
            pl.BlockSpec(b3.shape, lambda i: (0, 0)),
        ],
        out_specs=pl.BlockSpec((d_out, tile_b), lambda i: (0, i)),  # lane-dense output blocks
        compiler_params=pltpu.CompilerParams(
            dimension_semantics=("parallel",),  # shard batch tiles across v7x's 2 TCs
        ),
        cost_estimate=cost,
    )(x, w1, b1, w2, b2, w3, b3)
    return out_T


def mlp_3l_forward(x, params, **kwargs):
    """Drop-in PyTorch semantics: (B, d_in) -> (B, 10).

    The final small (10,B)->(B,10) transpose is the only boundary layout pass left; prefer
    mlp_3l_forward_transposed when the consumer can take features-major output.
    """
    return mlp_3l_forward_transposed(x, params, **kwargs).T


def init_params(key, input_dim):
    """Synthetic nn.Linear-style init. Weights stored (out, in), biases (out, 1), all f32."""
    ks = jax.random.split(key, 6)
    dims = [(input_dim, 4), (4, 5), (5, 10)]
    params = {}
    for i, (d_in, d_out) in enumerate(dims, start=1):
        bound = 1.0 / float(d_in) ** 0.5
        params[f"w{i}"] = jax.random.uniform(
            ks[2 * (i - 1)], (d_out, d_in), jnp.float32, -bound, bound)
        params[f"b{i}"] = jax.random.uniform(
            ks[2 * (i - 1) + 1], (d_out, 1), jnp.float32, -bound, bound)
    return params


def reference_forward(x, params):
    h1 = jnp.maximum(x @ params["w1"].T + params["b1"][:, 0], 0.0)
    h2 = jnp.maximum(h1 @ params["w2"].T + params["b2"][:, 0], 0.0)
    return h2 @ params["w3"].T + params["b3"][:, 0]


if __name__ == "__main__":
    key = jax.random.PRNGKey(0)
    k_x, k_p, k_x2 = jax.random.split(key, 3)

    # Small-shape check (single full-extent block), exact f32 path.
    batch, input_dim = 8, 16
    x = jax.random.normal(k_x, (batch, input_dim), jnp.float32)
    params = init_params(k_p, input_dim)
    ref = reference_forward(x, params)

    out_f32 = jax.block_until_ready(mlp_3l_forward(x, params, compute_dtype=jnp.float32))
    assert out_f32.shape == (batch, 10), out_f32.shape
    assert jnp.allclose(out_f32, ref, atol=1e-5, rtol=1e-5), "mismatch vs reference (f32)"

    # Default bf16-compute path (f32 accumulation) -- looser tolerance.
    out_bf16 = jax.block_until_ready(mlp_3l_forward(x, params))
    assert out_bf16.shape == (batch, 10), out_bf16.shape
    assert jnp.allclose(out_bf16, ref, atol=3e-2, rtol=3e-2), "mismatch vs reference (bf16)"

    # Tiled path: B=300 -> tile_b=256, grid=2 with a padded tail block, f32 for tight compare.
    big_b = 300
    x2 = jax.random.normal(k_x2, (big_b, input_dim), jnp.float32)
    ref2 = reference_forward(x2, params)
    out2 = jax.block_until_ready(mlp_3l_forward(x2, params, compute_dtype=jnp.float32))
    assert out2.shape == (big_b, 10), out2.shape
    assert jnp.allclose(out2, ref2, atol=1e-5, rtol=1e-5), "mismatch vs reference (tiled)"

    # Transposed-output entry point (zero boundary transposes).
    out2_T = jax.block_until_ready(
        mlp_3l_forward_transposed(x2, params, compute_dtype=jnp.float32))
    assert out2_T.shape == (10, big_b), out2_T.shape
    assert jnp.allclose(out2_T.T, ref2, atol=1e-5, rtol=1e-5), "mismatch vs reference (T)"

    print("KERNEL_OK")
</pallas_src>

<mosaic_0001>
module attributes {stable_mosaic.version = 11 : i64} {
  func.func @mlp_kernel(%arg0: i32, %arg1: memref<8x16xf32, #tpu.memory_space<vmem>>, %arg2: memref<4x16xf32, #tpu.memory_space<vmem>>, %arg3: memref<4x1xf32, #tpu.memory_space<vmem>>, %arg4: memref<5x4xf32, #tpu.memory_space<vmem>>, %arg5: memref<5x1xf32, #tpu.memory_space<vmem>>, %arg6: memref<10x5xf32, #tpu.memory_space<vmem>>, %arg7: memref<10x1xf32, #tpu.memory_space<vmem>>, %arg8: memref<10x8xf32, #tpu.memory_space<vmem>>) attributes {dimension_semantics = [#tpu.dimension_semantics<parallel>], iteration_bounds = array<i64: 1>, scalar_prefetch = 0 : i64, scratch_operands = 0 : i64, tpu.core_type = #tpu.core_type<tc>, window_params = [{transform_indices = @transform_0, window_bounds = array<i64: 8, 16>}, {pipeline_mode = #tpu.pipeline_mode<synchronous>, transform_indices = @transform_1, window_bounds = array<i64: 4, 16>}, {pipeline_mode = #tpu.pipeline_mode<synchronous>, transform_indices = @transform_2, window_bounds = array<i64: 4, 1>}, {pipeline_mode = #tpu.pipeline_mode<synchronous>, transform_indices = @transform_3, window_bounds = array<i64: 5, 4>}, {pipeline_mode = #tpu.pipeline_mode<synchronous>, transform_indices = @transform_4, window_bounds = array<i64: 5, 1>}, {pipeline_mode = #tpu.pipeline_mode<synchronous>, transform_indices = @transform_5, window_bounds = array<i64: 10, 5>}, {pipeline_mode = #tpu.pipeline_mode<synchronous>, transform_indices = @transform_6, window_bounds = array<i64: 10, 1>}, {transform_indices = @transform_7, window_bounds = array<i64: 10, 8>}]} {
    %c0 = arith.constant 0 : index
    %c0_0 = arith.constant 0 : index
    %0 = vector.load %arg1[%c0, %c0_0] : memref<8x16xf32, #tpu.memory_space<vmem>>, vector<8x16xf32>
    %c0_1 = arith.constant 0 : index
    %c0_2 = arith.constant 0 : index
    %1 = vector.load %arg2[%c0_1, %c0_2] : memref<4x16xf32, #tpu.memory_space<vmem>>, vector<4x16xf32>
    %cst = arith.constant dense<0.000000e+00> : vector<4x8xf32>
    %2 = tpu.matmul %1, %0, %cst {dimension_numbers = #tpu.dot_dimension_numbers<[1], [1], [0], [0], [0, 0, 1, 0], [], []>} : vector<4x16xf32>, vector<8x16xf32>, vector<4x8xf32> -> vector<4x8xf32>
    %c0_3 = arith.constant 0 : index
    %c0_4 = arith.constant 0 : index
    %3 = vector.load %arg3[%c0_3, %c0_4] : memref<4x1xf32, #tpu.memory_space<vmem>>, vector<4x1xf32>
    %4 = vector.broadcast %3 : vector<4x1xf32> to vector<4x8xf32>
    %5 = arith.addf %2, %4 : vector<4x8xf32>
    %cst_5 = arith.constant 0.000000e+00 : f32
    %6 = vector.broadcast %cst_5 : f32 to vector<4x8xf32>
    %7 = arith.maximumf %5, %6 : vector<4x8xf32>
    %c0_6 = arith.constant 0 : index
    %c0_7 = arith.constant 0 : index
    %8 = vector.load %arg4[%c0_6, %c0_7] : memref<5x4xf32, #tpu.memory_space<vmem>>, vector<5x4xf32>
    %cst_8 = arith.constant dense<0.000000e+00> : vector<5x8xf32>
    %9 = tpu.matmul %8, %7, %cst_8 {dimension_numbers = #tpu.dot_dimension_numbers<[1], [0], [0], [1], [0, 0, 1, 1], [], []>} : vector<5x4xf32>, vector<4x8xf32>, vector<5x8xf32> -> vector<5x8xf32>
    %c0_9 = arith.constant 0 : index
    %c0_10 = arith.constant 0 : index
    %10 = vector.load %arg5[%c0_9, %c0_10] : memref<5x1xf32, #tpu.memory_space<vmem>>, vector<5x1xf32>
    %11 = vector.broadcast %10 : vector<5x1xf32> to vector<5x8xf32>
    %12 = arith.addf %9, %11 : vector<5x8xf32>
    %cst_11 = arith.constant 0.000000e+00 : f32
    %13 = vector.broadcast %cst_11 : f32 to vector<5x8xf32>
    %14 = arith.maximumf %12, %13 : vector<5x8xf32>
    %c0_12 = arith.constant 0 : index
    %c0_13 = arith.constant 0 : index
    %15 = vector.load %arg6[%c0_12, %c0_13] : memref<10x5xf32, #tpu.memory_space<vmem>>, vector<10x5xf32>
    %cst_14 = arith.constant dense<0.000000e+00> : vector<10x8xf32>
    %16 = tpu.matmul %15, %14, %cst_14 {dimension_numbers = #tpu.dot_dimension_numbers<[1], [0], [0], [1], [0, 0, 1, 1], [], []>} : vector<10x5xf32>, vector<5x8xf32>, vector<10x8xf32> -> vector<10x8xf32>
    %c0_15 = arith.constant 0 : index
    %c0_16 = arith.constant 0 : index
    %17 = vector.load %arg7[%c0_15, %c0_16] : memref<10x1xf32, #tpu.memory_space<vmem>>, vector<10x1xf32>
    %18 = vector.broadcast %17 : vector<10x1xf32> to vector<10x8xf32>
    %19 = arith.addf %16, %18 : vector<10x8xf32>
    %c0_17 = arith.constant 0 : index
    %c0_18 = arith.constant 0 : index
    %20 = vector.load %arg8[%c0_17, %c0_18] : memref<10x8xf32, #tpu.memory_space<vmem>>, vector<10x8xf32>
    tpu.vector_store %arg8[%c0_17, %c0_18], %19 {strides = array<i32>} : memref<10x8xf32, #tpu.memory_space<vmem>>, vector<10x8xf32>,
    return
  }
  func.func @transform_0(%arg0: i32) -> (i32, i32) {
    %c0_i32 = arith.constant 0 : i32
    %c0_i32_0 = arith.constant 0 : i32
    return %arg0, %c0_i32 : i32, i32
  }
  func.func @transform_1(%arg0: i32) -> (i32, i32) {
    %c0_i32 = arith.constant 0 : i32
    %c0_i32_0 = arith.constant 0 : i32
    %c0_i32_1 = arith.constant 0 : i32
    return %c0_i32, %c0_i32_0 : i32, i32
  }
  func.func @transform_2(%arg0: i32) -> (i32, i32) {
    %c0_i32 = arith.constant 0 : i32
    %c0_i32_0 = arith.constant 0 : i32
    %c0_i32_1 = arith.constant 0 : i32
    return %c0_i32, %c0_i32_0 : i32, i32
  }
  func.func @transform_3(%arg0: i32) -> (i32, i32) {
    %c0_i32 = arith.constant 0 : i32
    %c0_i32_0 = arith.constant 0 : i32
    %c0_i32_1 = arith.constant 0 : i32
    return %c0_i32, %c0_i32_0 : i32, i32
  }
  func.func @transform_4(%arg0: i32) -> (i32, i32) {
    %c0_i32 = arith.constant 0 : i32
    %c0_i32_0 = arith.constant 0 : i32
    %c0_i32_1 = arith.constant 0 : i32
    return %c0_i32, %c0_i32_0 : i32, i32
  }
  func.func @transform_5(%arg0: i32) -> (i32, i32) {
    %c0_i32 = arith.constant 0 : i32
    %c0_i32_0 = arith.constant 0 : i32
    %c0_i32_1 = arith.constant 0 : i32
    return %c0_i32, %c0_i32_0 : i32, i32
  }
  func.func @transform_6(%arg0: i32) -> (i32, i32) {
    %c0_i32 = arith.constant 0 : i32
    %c0_i32_0 = arith.constant 0 : i32
    %c0_i32_1 = arith.constant 0 : i32
    return %c0_i32, %c0_i32_0 : i32, i32
  }
  func.func @transform_7(%arg0: i32) -> (i32, i32) {
    %c0_i32 = arith.constant 0 : i32
    %c0_i32_0 = arith.constant 0 : i32
    return %c0_i32, %arg0 : i32, i32
  }
}

</mosaic_0001>

<llo_original>
// kernel: tpu_custom_call.1
$region0: #{tpu_custom_call.1}
  #allocation0 [shape = 'u32[]', space=smem, size = 0x4, offset = 0x4, fixed_abs, tag = 'smem constant byte address 0x4 - core index']
  #allocation1 [shape = 'u32[72,128]{1,0:T(1,128)}', space=vmem, size = 0x9000, scoped, tag = 'internal scratch']
  %s0 = inlined_call_operand.vmem [shape: f32[8,16], index: 0, kind: input, shape index: {}]
  %s1 = inlined_call_operand.vmem [shape: f32[4,16], index: 1, kind: input, shape index: {}]
  %s2 = inlined_call_operand.vmem [shape: f32[4,1], index: 2, kind: input, shape index: {}]
  %s3 = inlined_call_operand.vmem [shape: f32[5,4], index: 3, kind: input, shape index: {}]
  %s4 = inlined_call_operand.vmem [shape: f32[5,1], index: 4, kind: input, shape index: {}]
  %s5 = inlined_call_operand.vmem [shape: f32[10,5], index: 5, kind: input, shape index: {}]
  %s6 = inlined_call_operand.vmem [shape: f32[10,1], index: 6, kind: input, shape index: {}]
  %s7 = inlined_call_operand.vmem [shape: f32[10,8], index: 7, kind: output, shape index: {}]
  %s8 = sld [smem:[#allocation0]]
  $region38: #{tpu_custom_call.1} parent=0
    _
  %s10 = ssub.s32 1, %s8
  %s11 = scalar_select 0, %s10, %s8
  // Predicated region
  $region2: #{tpu_custom_call.1} parent=0 // pred_check
    _
  $region3: #{tpu_custom_call.1} parent=0 // pred_check_branch
    %13 = sbr.rel (0) target = $region5
  $region4: #{tpu_custom_call.1} parent=0 // pred_region
    _
  $region5: #{tpu_custom_call.1} parent=0 // pred_fallthru
    _
  // Predicated region
  $region6: #{tpu_custom_call.1} parent=0 // pred_check
    _
  $region7: #{tpu_custom_call.1} parent=0 // pred_check_branch
    %15 = sbr.rel (0) target = $region9
  $region8: #{tpu_custom_call.1} parent=0 // pred_region
    _
  $region9: #{tpu_custom_call.1} parent=0 // pred_fallthru
    _
  // Predicated region
  $region10: #{tpu_custom_call.1} parent=0 // pred_check
    _
  $region11: #{tpu_custom_call.1} parent=0 // pred_check_branch
    %17 = sbr.rel (0) target = $region13
  $region12: #{tpu_custom_call.1} parent=0 // pred_region
    _
  $region13: #{tpu_custom_call.1} parent=0 // pred_fallthru
    _
  // Predicated region
  $region14: #{tpu_custom_call.1} parent=0 // pred_check
    _
  $region15: #{tpu_custom_call.1} parent=0 // pred_check_branch
    %19 = sbr.rel (0) target = $region17
  $region16: #{tpu_custom_call.1} parent=0 // pred_region
    _
  $region17: #{tpu_custom_call.1} parent=0 // pred_fallthru
    _
  // Predicated region
  $region18: #{tpu_custom_call.1} parent=0 // pred_check
    _
  $region19: #{tpu_custom_call.1} parent=0 // pred_check_branch
    %21 = sbr.rel (0) target = $region21
  $region20: #{tpu_custom_call.1} parent=0 // pred_region
    _
  $region21: #{tpu_custom_call.1} parent=0 // pred_fallthru
    _
  // Predicated region
  $region22: #{tpu_custom_call.1} parent=0 // pred_check
    _
  $region23: #{tpu_custom_call.1} parent=0 // pred_check_branch
    %23 = sbr.rel (0) target = $region25
  $region24: #{tpu_custom_call.1} parent=0 // pred_region
    _
  $region25: #{tpu_custom_call.1} parent=0 // pred_fallthru
    _
  // Predicated region
  $region26: #{tpu_custom_call.1} parent=0 // pred_check
    _
  $region27: #{tpu_custom_call.1} parent=0 // pred_check_branch
    %25 = sbr.rel (0) target = $region29
  $region28: #{tpu_custom_call.1} parent=0 // pred_region
    _
  $region29: #{tpu_custom_call.1} parent=0 // pred_fallthru
    _
  %v26 = vld [vmem:[%s0] sm:$0xff]
  %v27 = vld [vmem:[%s1] sm:$0xf]
  %v28 = vld [vmem:[%s2] sm:$0xf]
  %30 = vset.pattern.permute.xlu0 0
  %31 = vperm.xlu0 %30, %v28
  %v32 = vpop.permute.xlu0 %31
  %vm34 = vcmask 130048
  %v36 = vsel %vm34, %v27, 0
  %v39 = vsel %vm34, %v26, 0
  %41 = vmatpush.xpose.msra.mxu0 0.0
  %42 = vmatpush.xpose.msra.mxu0 0.0
  %43 = vmatpush.xpose.msra.mxu0 0.0
  %44 = vmatpush.xpose.msra.mxu0 0.0
  %45 = vmatpush.xpose.msra.mxu0 0.0
  %46 = vmatpush.xpose.msra.mxu0 0.0
  %47 = vmatpush.xpose.msra.mxu0 0.0
  %48 = vmatpush.xpose.msra.mxu0 0.0
  %49 = vmatpush.xpose.msra.mxu0 0.0
  %50 = vmatpush.xpose.msra.mxu0 0.0
  %51 = vmatpush.xpose.msra.mxu0 0.0
  %52 = vmatpush.xpose.msra.mxu0 0.0
  %53 = vmatpush.xpose.msra.mxu0 0.0
  %54 = vmatpush.xpose.msra.mxu0 0.0
  %55 = vmatpush.xpose.msra.mxu0 0.0
  %56 = vmatpush.xpose.msra.mxu0 %v39
  %57 = vmatmul.f32.gmra.mxu0 %v36
  %v58 = vpop.f32.mrf.mxu0
  %v59 = vadd.f32 %v32, %v58
  %60 = vdwg.mxu0
  %v61 = vmax.f32 %v59, 0.0
  %v62 = vld [vmem:[%s3] sm:$0x1f]
  %v63 = vld [vmem:[%s4] sm:$0x1f]
  %65 = vset.pattern.permute.xlu0 0
  %66 = vperm.xlu0 %65, %v63
  %v67 = vpop.permute.xlu0 %66
  %vm69 = vcmask 31744
  %v71 = vsel %vm69, %v62, 0
  %vm73 = vcmask 1043456
  %v75 = vsel %vm73, %v61, 0
  %77 = vmatpush.msra.mxu0 0.0
  %78 = vmatpush.msra.mxu0 0.0
  %79 = vmatpush.msra.mxu0 0.0
  %80 = vmatpush.msra.mxu0 0.0
  %81 = vmatpush.msra.mxu0 0.0
  %82 = vmatpush.msra.mxu0 0.0
  %83 = vmatpush.msra.mxu0 0.0
  %84 = vmatpush.msra.mxu0 0.0
  %85 = vmatpush.msra.mxu0 0.0
  %86 = vmatpush.msra.mxu0 0.0
  %87 = vmatpush.msra.mxu0 0.0
  %88 = vmatpush.msra.mxu0 0.0
  %89 = vmatpush.msra.mxu0 0.0
  %90 = vmatpush.msra.mxu0 0.0
  %91 = vmatpush.msra.mxu0 0.0
  %92 = vmatpush.msra.mxu0 %v75
  %93 = vmatmul.f32.gmra.mxu0 %v71
  %v94 = vpop.f32.mrf.mxu0
  %v95 = vadd.f32 %v67, %v94
  %96 = vdwg.mxu0
  %v97 = vmax.f32 %v95, 0.0
  %v98 = vld [vmem:[%s5] sm:$0xff]
  %v99 = vld [vmem:[%s5 + $0x8] sm:$0x3]
  %v100 = vld [vmem:[%s6] sm:$0xff]
  %v101 = vld [vmem:[%s6 + $0x8] sm:$0x3]
  %103 = vset.pattern.permute.xlu0 0
  %104 = vperm.xlu0 %103, %v100
  %v105 = vpop.permute.xlu0 %104
  %108 = vset.pattern.permute.xlu0 0
  %109 = vperm.xlu0 %108, %v101
  %v110 = vpop.permute.xlu0 %109
  %vm112 = vcmask 39936
  %v114 = vsel %vm112, %v98, 0
  %v117 = vsel %vm112, %v99, 0
  %vm119 = vcmask 1044480
  %v121 = vsel %vm119, %v97, 0
  %123 = vmatpush.msra.mxu0 0.0
  %124 = vmatpush.msra.mxu0 0.0
  %125 = vmatpush.msra.mxu0 0.0
  %126 = vmatpush.msra.mxu0 0.0
  %127 = vmatpush.msra.mxu0 0.0
  %128 = vmatpush.msra.mxu0 0.0
  %129 = vmatpush.msra.mxu0 0.0
  %130 = vmatpush.msra.mxu0 0.0
  %131 = vmatpush.msra.mxu0 0.0
  %132 = vmatpush.msra.mxu0 0.0
  %133 = vmatpush.msra.mxu0 0.0
  %134 = vmatpush.msra.mxu0 0.0
  %135 = vmatpush.msra.mxu0 0.0
  %136 = vmatpush.msra.mxu0 0.0
  %137 = vmatpush.msra.mxu0 0.0
  %138 = vmatpush.msra.mxu0 %v121
  %139 = vmatmul.f32.gmra.mxu0 %v114
  %v140 = vpop.f32.mrf.mxu0
  %v141 = vadd.f32 %v105, %v140
  %142 = vmatmul.f32.gmra.mxu0 %v117
  %v143 = vpop.f32.mrf.mxu0
  %v144 = vadd.f32 %v110, %v143
  %145 = vdwg.mxu0
  %vm146 = vcmask 64512
  %147 = vst.msk [vmem:[%s7] sm:$0xff] %vm146, %v141
  %vm148 = vcmask 58368
  %149 = vst.msk [vmem:[%s7 + $0x8] sm:$0x3] %vm148, %v144
  // Predicated region
  $region30: #{tpu_custom_call.1} parent=0 // pred_check
    _
  $region31: #{tpu_custom_call.1} parent=0 // pred_check_branch
    %151 = sbr.rel (0) target = $region33
  $region32: #{tpu_custom_call.1} parent=0 // pred_region
    _
  $region33: #{tpu_custom_call.1} parent=0 // pred_fallthru
    _
  // Predicated region
  $region34: #{tpu_custom_call.1} parent=0 // pred_check
    _
  $region35: #{tpu_custom_call.1} parent=0 // pred_check_branch
    %153 = sbr.rel (0) target = $region37
  $region36: #{tpu_custom_call.1} parent=0 // pred_region
    _
  $region37: #{tpu_custom_call.1} parent=0 // pred_fallthru
    _

</llo_original>
